<compile_context>
chip_gen: v5e
topology: v5e:2x2
jax: 0.10.0
libtpu: 0.0.40
codegen_flags: <defaults>
</compile_context>

<pallas_src>
import functools

import jax
import jax.numpy as jnp
from jax import lax
from jax.experimental import pallas as pl
from jax.experimental.pallas import tpu as pltpu

LANES = 128
MAX_TILE_ROWS = 1024   # (1024,128) f32 = 512 KiB per block
NUM_SPLITS = 2         # core-parallel split for v7x; harmless on 1-TC chips


def _iou_kernel(x_ref, y_ref, out_xy_ref, out_sum_ref, acc_xy, acc_sum, *,
                rows, tile_rows, num_tiles, tiles_per_split):
    s = pl.program_id(0)          # core-parallel split index
    i = pl.program_id(1)          # reduction step within the split

    @pl.when(i == 0)
    def _():
        acc_xy[...] = jnp.zeros_like(acc_xy)
        acc_sum[...] = jnp.zeros_like(acc_sum)

    tile = s * tiles_per_split + i

    @pl.when(tile < num_tiles)    # skip clamped overhang tiles of the last split
    def _():
        x = x_ref[...].astype(jnp.float32)
        y = y_ref[...].astype(jnp.float32)
        if rows % tile_rows != 0:             # static: ragged last tile possible
            rid = tile * tile_rows + lax.broadcasted_iota(
                jnp.int32, (tile_rows, LANES), 0)
            valid = (rid < rows).astype(jnp.float32)
            x = x * valid                     # zero contributions to BOTH sums
            y = y * valid
        acc_xy[...] += x * y                  # pure VPU elementwise accumulation
        acc_sum[...] += x + y

    @pl.when(i == pl.num_programs(1) - 1)
    def _():
        # One full cross-lane/sublane reduction per split, paid once.
        part_xy = jnp.sum(acc_xy[...])
        part_sum = jnp.sum(acc_sum[...])
        out_xy_ref[...] = jnp.full((8, LANES), part_xy, jnp.float32)
        out_sum_ref[...] = jnp.full((8, LANES), part_sum, jnp.float32)


def _round_up(a, b):
    return (a + b - 1) // b * b


@jax.jit
def iou_pallas(inputs, targets, smooth=0.0):
    x = inputs.reshape(-1)        # native dtype; cast happens in-kernel
    y = targets.reshape(-1)
    n = x.shape[0]

    # Pad only if the flat length is not lane-aligned (zero padding does not
    # change either sum).  Usually a no-op for NCHW segmentation shapes.
    lane_pad = (-n) % LANES
    if lane_pad:
        x = jnp.pad(x, (0, lane_pad))
        y = jnp.pad(y, (0, lane_pad))
    rows = (n + LANES - 1) // LANES
    x = x.reshape(rows, LANES)
    y = y.reshape(rows, LANES)

    tile_rows = min(MAX_TILE_ROWS, _round_up(rows, 8))
    num_tiles = pl.cdiv(rows, tile_rows)
    tiles_per_split = pl.cdiv(num_tiles, NUM_SPLITS)

    def tile_map(s, i):
        # Clamp so the block index is always in range; the kernel masks out
        # (via `tile < num_tiles`) any clamped overhang iterations.
        return (jnp.minimum(s * tiles_per_split + i, num_tiles - 1), 0)

    kernel = functools.partial(
        _iou_kernel, rows=rows, tile_rows=tile_rows,
        num_tiles=num_tiles, tiles_per_split=tiles_per_split)

    out_xy, out_sum = pl.pallas_call(
        kernel,
        out_shape=(jax.ShapeDtypeStruct((NUM_SPLITS * 8, LANES), jnp.float32),
                   jax.ShapeDtypeStruct((NUM_SPLITS * 8, LANES), jnp.float32)),
        grid=(NUM_SPLITS, tiles_per_split),
        in_specs=[
            pl.BlockSpec((tile_rows, LANES), tile_map),
            pl.BlockSpec((tile_rows, LANES), tile_map),
        ],
        out_specs=(pl.BlockSpec((8, LANES), lambda s, i: (s, 0)),
                   pl.BlockSpec((8, LANES), lambda s, i: (s, 0))),
        scratch_shapes=[pltpu.VMEM((tile_rows, LANES), jnp.float32),
                        pltpu.VMEM((tile_rows, LANES), jnp.float32)],
        compiler_params=pltpu.CompilerParams(
            dimension_semantics=("parallel", "arbitrary")),
    )(x, y)

    # Each split wrote its scalar partial broadcast over its (8,128) block.
    part_xy = out_xy.reshape(NUM_SPLITS, 8, LANES)[:, 0, 0]
    part_sum = out_sum.reshape(NUM_SPLITS, 8, LANES)[:, 0, 0]
    intersection = jnp.sum(part_xy)
    total = jnp.sum(part_sum)
    union = total - intersection
    smooth = jnp.asarray(smooth, jnp.float32)
    # NOTE: smooth=0 with all-zero inputs/targets yields 0/0 = NaN, matching
    # the PyTorch module's semantics.
    return (intersection + smooth) / (union + smooth)


def iou_ref(inputs, targets, smooth=0.0):
    x = inputs.reshape(-1).astype(jnp.float32)
    y = targets.reshape(-1).astype(jnp.float32)
    intersection = jnp.sum(x * y)
    total = jnp.sum(x + y)
    union = total - intersection
    return (intersection + smooth) / (union + smooth)


if __name__ == "__main__":
    key = jax.random.PRNGKey(0)
    k1, k2 = jax.random.split(key)
    # Shapes consistent with a segmentation loss: (N, C, H, W) predictions
    # in [0,1] (post-sigmoid) and binary targets.
    inputs = jax.random.uniform(k1, (2, 4, 16, 16), dtype=jnp.float32)
    targets = (jax.random.uniform(k2, (2, 4, 16, 16)) > 0.5).astype(jnp.float32)

    out = iou_pallas(inputs, targets, 0.0)
    out = jax.block_until_ready(out)

    ref = iou_ref(inputs, targets, 0.0)
    assert jnp.allclose(out, ref, rtol=1e-5, atol=1e-6), (out, ref)
    print("KERNEL_OK")
</pallas_src>

<mosaic_0001>
module attributes {stable_mosaic.version = 11 : i64} {
  func.func @_iou_kernel(%arg0: i32, %arg1: i32, %arg2: memref<16x128xf32, #tpu.memory_space<vmem>>, %arg3: memref<16x128xf32, #tpu.memory_space<vmem>>, %arg4: memref<8x128xf32, #tpu.memory_space<vmem>>, %arg5: memref<8x128xf32, #tpu.memory_space<vmem>>, %arg6: memref<16x128xf32, #tpu.memory_space<vmem>>, %arg7: memref<16x128xf32, #tpu.memory_space<vmem>>) attributes {dimension_semantics = [#tpu.dimension_semantics<parallel>, #tpu.dimension_semantics<arbitrary>], iteration_bounds = array<i64: 2, 1>, scalar_prefetch = 0 : i64, scratch_operands = 2 : i64, tpu.core_type = #tpu.core_type<tc>, window_params = [{transform_indices = @transform_0, window_bounds = array<i64: 16, 128>}, {transform_indices = @transform_1, window_bounds = array<i64: 16, 128>}, {transform_indices = @transform_2, window_bounds = array<i64: 8, 128>}, {transform_indices = @transform_3, window_bounds = array<i64: 8, 128>}]} {
    %c0_i32 = arith.constant 0 : i32
    %0 = arith.cmpi eq, %arg1, %c0_i32 : i32
    %1 = arith.extui %0 : i1 to i32
    %c0_i32_0 = arith.constant 0 : i32
    %2 = arith.cmpi ne, %1, %c0_i32_0 : i32
    scf.if %2 {
      %cst = arith.constant 0.000000e+00 : f32
      %11 = vector.broadcast %cst : f32 to vector<16x128xf32>
      %c0 = arith.constant 0 : index
      %c0_5 = arith.constant 0 : index
      %12 = vector.load %arg6[%c0, %c0_5] : memref<16x128xf32, #tpu.memory_space<vmem>>, vector<16x128xf32>
      tpu.vector_store %arg6[%c0, %c0_5], %11 {strides = array<i32>} : memref<16x128xf32, #tpu.memory_space<vmem>>, vector<16x128xf32>,
      %cst_6 = arith.constant 0.000000e+00 : f32
      %13 = vector.broadcast %cst_6 : f32 to vector<16x128xf32>
      %c0_7 = arith.constant 0 : index
      %c0_8 = arith.constant 0 : index
      %14 = vector.load %arg7[%c0_7, %c0_8] : memref<16x128xf32, #tpu.memory_space<vmem>>, vector<16x128xf32>
      tpu.vector_store %arg7[%c0_7, %c0_8], %13 {strides = array<i32>} : memref<16x128xf32, #tpu.memory_space<vmem>>, vector<16x128xf32>,
    } else {
    }
    %c1_i32 = arith.constant 1 : i32
    %3 = arith.muli %arg0, %c1_i32 : i32
    %4 = arith.addi %3, %arg1 : i32
    %c1_i32_1 = arith.constant 1 : i32
    %5 = arith.cmpi slt, %4, %c1_i32_1 : i32
    %6 = arith.extui %5 : i1 to i32
    %c0_i32_2 = arith.constant 0 : i32
    %7 = arith.cmpi ne, %6, %c0_i32_2 : i32
    scf.if %7 {
      %c0 = arith.constant 0 : index
      %c0_5 = arith.constant 0 : index
      %11 = vector.load %arg2[%c0, %c0_5] : memref<16x128xf32, #tpu.memory_space<vmem>>, vector<16x128xf32>
      %c0_6 = arith.constant 0 : index
      %c0_7 = arith.constant 0 : index
      %12 = vector.load %arg3[%c0_6, %c0_7] : memref<16x128xf32, #tpu.memory_space<vmem>>, vector<16x128xf32>
      %c0_8 = arith.constant 0 : index
      %c0_9 = arith.constant 0 : index
      %13 = vector.load %arg6[%c0_8, %c0_9] : memref<16x128xf32, #tpu.memory_space<vmem>>, vector<16x128xf32>
      %14 = arith.mulf %11, %12 : vector<16x128xf32>
      %15 = arith.addf %13, %14 : vector<16x128xf32>
      %c0_10 = arith.constant 0 : index
      %c0_11 = arith.constant 0 : index
      %16 = vector.load %arg6[%c0_10, %c0_11] : memref<16x128xf32, #tpu.memory_space<vmem>>, vector<16x128xf32>
      tpu.vector_store %arg6[%c0_10, %c0_11], %15 {strides = array<i32>} : memref<16x128xf32, #tpu.memory_space<vmem>>, vector<16x128xf32>,
      %c0_12 = arith.constant 0 : index
      %c0_13 = arith.constant 0 : index
      %17 = vector.load %arg7[%c0_12, %c0_13] : memref<16x128xf32, #tpu.memory_space<vmem>>, vector<16x128xf32>
      %18 = arith.addf %11, %12 : vector<16x128xf32>
      %19 = arith.addf %17, %18 : vector<16x128xf32>
      %c0_14 = arith.constant 0 : index
      %c0_15 = arith.constant 0 : index
      %20 = vector.load %arg7[%c0_14, %c0_15] : memref<16x128xf32, #tpu.memory_space<vmem>>, vector<16x128xf32>
      tpu.vector_store %arg7[%c0_14, %c0_15], %19 {strides = array<i32>} : memref<16x128xf32, #tpu.memory_space<vmem>>, vector<16x128xf32>,
    } else {
    }
    %c0_i32_3 = arith.constant 0 : i32
    %8 = arith.cmpi eq, %arg1, %c0_i32_3 : i32
    %9 = arith.extui %8 : i1 to i32
    %c0_i32_4 = arith.constant 0 : i32
    %10 = arith.cmpi ne, %9, %c0_i32_4 : i32
    scf.if %10 {
      %c0 = arith.constant 0 : index
      %c0_5 = arith.constant 0 : index
      %11 = vector.load %arg6[%c0, %c0_5] : memref<16x128xf32, #tpu.memory_space<vmem>>, vector<16x128xf32>
      %12 = vector.shape_cast %11 : vector<16x128xf32> to vector<1x16x128xf32>
      %cst = arith.constant dense<0.000000e+00> : vector<1xf32>
      %13 = vector.multi_reduction <add>, %12, %cst [1, 2] : vector<1x16x128xf32> to vector<1xf32>
      %14 = vector.shape_cast %13 : vector<1xf32> to vector<1x1x1xf32>
      %15 = vector.extract %14[0, 0, 0] : f32 from vector<1x1x1xf32>
      %c0_6 = arith.constant 0 : index
      %c0_7 = arith.constant 0 : index
      %16 = vector.load %arg7[%c0_6, %c0_7] : memref<16x128xf32, #tpu.memory_space<vmem>>, vector<16x128xf32>
      %17 = vector.shape_cast %16 : vector<16x128xf32> to vector<1x16x128xf32>
      %cst_8 = arith.constant dense<0.000000e+00> : vector<1xf32>
      %18 = vector.multi_reduction <add>, %17, %cst_8 [1, 2] : vector<1x16x128xf32> to vector<1xf32>
      %19 = vector.shape_cast %18 : vector<1xf32> to vector<1x1x1xf32>
      %20 = vector.extract %19[0, 0, 0] : f32 from vector<1x1x1xf32>
      %21 = vector.broadcast %15 : f32 to vector<8x128xf32>
      %c0_9 = arith.constant 0 : index
      %c0_10 = arith.constant 0 : index
      %22 = vector.load %arg4[%c0_9, %c0_10] : memref<8x128xf32, #tpu.memory_space<vmem>>, vector<8x128xf32>
      tpu.vector_store %arg4[%c0_9, %c0_10], %21 {strides = array<i32>} : memref<8x128xf32, #tpu.memory_space<vmem>>, vector<8x128xf32>,
      %23 = vector.broadcast %20 : f32 to vector<8x128xf32>
      %c0_11 = arith.constant 0 : index
      %c0_12 = arith.constant 0 : index
      %24 = vector.load %arg5[%c0_11, %c0_12] : memref<8x128xf32, #tpu.memory_space<vmem>>, vector<8x128xf32>
      tpu.vector_store %arg5[%c0_11, %c0_12], %23 {strides = array<i32>} : memref<8x128xf32, #tpu.memory_space<vmem>>, vector<8x128xf32>,
    } else {
    }
    return
  }
  func.func @transform_0(%arg0: i32, %arg1: i32) -> (i32, i32) {
    %c1_i32 = arith.constant 1 : i32
    %0 = arith.muli %arg0, %c1_i32 : i32
    %1 = arith.addi %0, %arg1 : i32
    %c0_i32 = arith.constant 0 : i32
    %2 = arith.minsi %1, %c0_i32 : i32
    %c0_i32_0 = arith.constant 0 : i32
    %c0_i32_1 = arith.constant 0 : i32
    return %2, %c0_i32_0 : i32, i32
  }
  func.func @transform_1(%arg0: i32, %arg1: i32) -> (i32, i32) {
    %c1_i32 = arith.constant 1 : i32
    %0 = arith.muli %arg0, %c1_i32 : i32
    %1 = arith.addi %0, %arg1 : i32
    %c0_i32 = arith.constant 0 : i32
    %2 = arith.minsi %1, %c0_i32 : i32
    %c0_i32_0 = arith.constant 0 : i32
    %c0_i32_1 = arith.constant 0 : i32
    return %2, %c0_i32_0 : i32, i32
  }
  func.func @transform_2(%arg0: i32, %arg1: i32) -> (i32, i32) {
    %c0_i32 = arith.constant 0 : i32
    %c0_i32_0 = arith.constant 0 : i32
    return %arg0, %c0_i32 : i32, i32
  }
  func.func @transform_3(%arg0: i32, %arg1: i32) -> (i32, i32) {
    %c0_i32 = arith.constant 0 : i32
    %c0_i32_0 = arith.constant 0 : i32
    return %arg0, %c0_i32 : i32, i32
  }
}

</mosaic_0001>

<llo_original>
// kernel: iou_pallas.1
$region0: #{iou_pallas.1}
  #allocation0 [shape = 'u32[]', space=smem, size = 0x4, offset = 0x4, fixed_abs, tag = 'smem constant byte address 0x4 - core index']
  #allocation1 [shape = 'u32[72,128]{1,0:T(1,128)}', space=vmem, size = 0x9000, scoped, tag = 'internal scratch']
  #allocation2 [shape = 'f32[16,128]{1,0:T(8,128)}', space=vmem, size = 0x2000, scoped, tag = 'scratch operand']
  #allocation3 [shape = 'f32[16,128]{1,0:T(8,128)}', space=vmem, size = 0x2000, scoped, tag = 'scratch operand']
  %s0 = inlined_call_operand.vmem [shape: f32[16,128], index: 0, kind: input, shape index: {}]
  %s1 = inlined_call_operand.vmem [shape: f32[16,128], index: 1, kind: input, shape index: {}]
  %s2 = inlined_call_operand.vmem [shape: f32[16,128], index: 2, kind: output, shape index: {0}]
  %s3 = inlined_call_operand.vmem [shape: f32[16,128], index: 3, kind: output, shape index: {1}]
  %4 = xla_tuple %s2, %s3
  %s5 = sld [smem:[#allocation0]]
  $region61: #{iou_pallas.1} parent=0
    _
  %s7 = ssub.s32 1, %s5
  %s8 = scalar_select 0, %s7, %s5
  loop: start=0, step=1, limit=4
  $region2: #{iou_pallas.1} parent=0 // loop_pre_header
    _
  $region3: #{iou_pallas.1} parent=0 // loop_header
    %s10 = sphi 0, %s14
    %p11 = scmp.ge.s32.totalorder %s10, 4
    %s17 = sphi 0, %s29
    %s18 = sphi 0, %s25
    %s19 = sphi 0, %s17
    %s20 = sphi 0, %s18
    %s21 = sphi 0, %s19
    %s22 = sphi 0, %s20
    %s38 = sphi 0, %s40
    %s41 = sphi 0, %s38
    %s42 = sphi 0, %s41
    %s58 = sphi 0, %s42
    %s70 = sphi 0, %s72
    %s73 = sphi 0, %s70
    %s74 = sphi 0, %s73
    %s90 = sphi 0, %s74
    %s96 = sphi 0, %s98
    %s99 = sphi 0, %s96
    %s100 = sphi 0, %s99
    %s116 = sphi 0, %s100
    %s122 = sphi 0, %s124
    %s125 = sphi 0, %s122
    %s126 = sphi 0, %s125
    %s142 = sphi 0, %s126
  $region4: #{iou_pallas.1} parent=0 // loop_header_branch
    %13 = sbr.rel (%p11) target = $region8
  $region5: #{iou_pallas.1} parent=0 // loop_body
    %s15 = ssub.s32 %s10, 1
    %s16 = ssub.s32 %s10, 2
    %s23 = sadd.s32 1, %s18
    %p24 = scmp.ge.s32.totalorder %s23, 1
    %s25 = scalar_select %p24, 0, %s23
    %s26 = sadd.s32 1, %s17
    %s27 = scalar_select %p24, %s26, %s17
    %p28 = scmp.ge.s32.totalorder %s27, 2
    %s29 = scalar_select %p28, 0, %s27
    %s30 = sadd.s32 %s17, %s18
    %p31 = scmp.lt.s32.totalorder %s30, 0
    %s32 = scalar_select %p31, %s30, 0
    %s33 = sadd.s32 %s29, %s25
    %p34 = scmp.lt.s32.totalorder %s33, 0
    %s35 = scalar_select %p34, %s33, 0
    %s36 = ssub.s32 %s32, %s35
    %p37 = scmp.eq.s32.totalorder %s36, 0
    %s39 = sadd.s32 %s38, 1
    %s40 = scalar_select %p37, %s38, %s39
    %p43 = pneg %p37
    %p44 = scmp.eq.s32.totalorder %s10, 1
    %p45 = por %p43, %p44
    %p46 = scmp.ne.s32.totalorder %s38, %s41
    %p47 = scmp.eq.s32.totalorder %s10, 0
    %p48 = por %p46, %p47
    %p49 = scmp.ne.s32.totalorder %s38, %s41
    %p50 = scmp.eq.s32.totalorder %s15, 1
    %p51 = por %p49, %p50
    %p52 = scmp.ne.s32.totalorder %s41, %s42
    %p53 = scmp.eq.s32.totalorder %s15, 0
    %p54 = por %p52, %p53
    %p55 = scmp.ne.s32.totalorder %s41, %s42
    %p56 = scmp.eq.s32.totalorder %s16, 1
    %p57 = por %p55, %p56
    %p59 = scmp.ne.s32.totalorder %s42, %s58
    %p60 = scmp.eq.s32.totalorder %s16, 0
    %p61 = por %p59, %p60
    %s62 = sadd.s32 %s17, %s18
    %p63 = scmp.lt.s32.totalorder %s62, 0
    %s64 = scalar_select %p63, %s62, 0
    %s65 = sadd.s32 %s29, %s25
    %p66 = scmp.lt.s32.totalorder %s65, 0
    %s67 = scalar_select %p66, %s65, 0
    %s68 = ssub.s32 %s64, %s67
    %p69 = scmp.eq.s32.totalorder %s68, 0
    %s71 = sadd.s32 %s70, 1
    %s72 = scalar_select %p69, %s70, %s71
    %p75 = pneg %p69
    %p76 = scmp.eq.s32.totalorder %s10, 1
    %p77 = por %p75, %p76
    %p78 = scmp.ne.s32.totalorder %s70, %s73
    %p79 = scmp.eq.s32.totalorder %s10, 0
    %p80 = por %p78, %p79
    %p81 = scmp.ne.s32.totalorder %s70, %s73
    %p82 = scmp.eq.s32.totalorder %s15, 1
    %p83 = por %p81, %p82
    %p84 = scmp.ne.s32.totalorder %s73, %s74
    %p85 = scmp.eq.s32.totalorder %s15, 0
    %p86 = por %p84, %p85
    %p87 = scmp.ne.s32.totalorder %s73, %s74
    %p88 = scmp.eq.s32.totalorder %s16, 1
    %p89 = por %p87, %p88
    %p91 = scmp.ne.s32.totalorder %s74, %s90
    %p92 = scmp.eq.s32.totalorder %s16, 0
    %p93 = por %p91, %p92
    %s94 = ssub.s32 %s17, %s29
    %p95 = scmp.eq.s32.totalorder %s94, 0
    %s97 = sadd.s32 %s96, 1
    %s98 = scalar_select %p95, %s96, %s97
    %p101 = pneg %p95
    %p102 = scmp.eq.s32.totalorder %s10, 1
    %p103 = por %p101, %p102
    %p104 = scmp.ne.s32.totalorder %s96, %s99
    %p105 = scmp.eq.s32.totalorder %s10, 0
    %p106 = por %p104, %p105
    %p107 = scmp.ne.s32.totalorder %s96, %s99
    %p108 = scmp.eq.s32.totalorder %s15, 1
    %p109 = por %p107, %p108
    %p110 = scmp.ne.s32.totalorder %s99, %s100
    %p111 = scmp.eq.s32.totalorder %s15, 0
    %p112 = por %p110, %p111
    %p113 = scmp.ne.s32.totalorder %s99, %s100
    %p114 = scmp.eq.s32.totalorder %s16, 1
    %p115 = por %p113, %p114
    %p117 = scmp.ne.s32.totalorder %s100, %s116
    %p118 = scmp.eq.s32.totalorder %s16, 0
    %p119 = por %p117, %p118
    %s120 = ssub.s32 %s17, %s29
    %p121 = scmp.eq.s32.totalorder %s120, 0
    %s123 = sadd.s32 %s122, 1
    %s124 = scalar_select %p121, %s122, %s123
    %p127 = pneg %p121
    %p128 = scmp.eq.s32.totalorder %s10, 1
    %p129 = por %p127, %p128
    %p130 = scmp.ne.s32.totalorder %s122, %s125
    %p131 = scmp.eq.s32.totalorder %s10, 0
    %p132 = por %p130, %p131
    %p133 = scmp.ne.s32.totalorder %s122, %s125
    %p134 = scmp.eq.s32.totalorder %s15, 1
    %p135 = por %p133, %p134
    %p136 = scmp.ne.s32.totalorder %s125, %s126
    %p137 = scmp.eq.s32.totalorder %s15, 0
    %p138 = por %p136, %p137
    %p139 = scmp.ne.s32.totalorder %s125, %s126
    %p140 = scmp.eq.s32.totalorder %s16, 1
    %p141 = por %p139, %p140
    %p143 = scmp.ne.s32.totalorder %s126, %s142
    %p144 = scmp.eq.s32.totalorder %s16, 0
    %p145 = por %p143, %p144
    %p146 = scmp.le.s32.totalorder 1, %s10
    %p147 = scmp.lt.s32.totalorder %s10, 3
    %p148 = pnand %p146, %p147
    %p149 = pneg %p148
    // Predicated region
    $region9: #{iou_pallas.1} parent=5 // pred_check
      _
    $region10: #{iou_pallas.1} parent=5 // pred_check_branch
      %151 = sbr.rel (%p148) target = $region12
    $region11: #{iou_pallas.1} parent=5 // pred_region
      %s152 = ssub.s32 %s10, 1
    $region12: #{iou_pallas.1} parent=5 // pred_fallthru
      _
    %p153 = scmp.lt.s32.totalorder %s10, 2
    // Predicated region
    $region13: #{iou_pallas.1} parent=5 // pred_check
      %p154 = pneg %p153
    $region14: #{iou_pallas.1} parent=5 // pred_check_branch
      %156 = sbr.rel (%p154) target = $region16
    $region15: #{iou_pallas.1} parent=5 // pred_region
      // Predicated region
      $region17: #{iou_pallas.1} parent=15 // pred_check
        %p157 = pneg %p48
      $region18: #{iou_pallas.1} parent=15 // pred_check_branch
        %159 = sbr.rel (%p157) target = $region20
      $region19: #{iou_pallas.1} parent=15 // pred_region
        %s160 = sadd.s32 %s17, %s18
        %p161 = scmp.lt.s32.totalorder %s160, 0
        %s162 = scalar_select %p161, %s160, 0
        %s163 = smul.u32 2, %s162
        %p164 = scmp.lt.s32.totalorder %s163, 1
        %s165 = scalar_select %p164, %s163, 1
        %s166 = smul.addr %s165, 8
        %s167 = scalar_lea.vmem %s0, %s166
        %s168 = sadd.s32 %s17, %s18
        %p169 = scmp.lt.s32.totalorder %s168, 0
        %s170 = scalar_select %p169, %s168, 0
        %s171 = smul.u32 2, %s170
      $region20: #{iou_pallas.1} parent=15 // pred_fallthru
        _
      // Predicated region
      $region21: #{iou_pallas.1} parent=15 // pred_check
        %p172 = pneg %p80
      $region22: #{iou_pallas.1} parent=15 // pred_check_branch
        %174 = sbr.rel (%p172) target = $region24
      $region23: #{iou_pallas.1} parent=15 // pred_region
        %s175 = sadd.s32 %s17, %s18
        %p176 = scmp.lt.s32.totalorder %s175, 0
        %s177 = scalar_select %p176, %s175, 0
        %s178 = smul.u32 2, %s177
        %p179 = scmp.lt.s32.totalorder %s178, 1
        %s180 = scalar_select %p179, %s178, 1
        %s181 = smul.addr %s180, 8
        %s182 = scalar_lea.vmem %s1, %s181
        %s183 = sadd.s32 %s17, %s18
        %p184 = scmp.lt.s32.totalorder %s183, 0
        %s185 = scalar_select %p184, %s183, 0
        %s186 = smul.u32 2, %s185
      $region24: #{iou_pallas.1} parent=15 // pred_fallthru
        _
    $region16: #{iou_pallas.1} parent=5 // pred_fallthru
      _
    %p187 = scmp.le.s32.totalorder 1, %s10
    %p188 = scmp.lt.s32.totalorder %s10, 3
    %p189 = pnand %p187, %p188
    %p190 = pneg %p189
    // Predicated region
    $region25: #{iou_pallas.1} parent=5 // pred_check
      _
    $region26: #{iou_pallas.1} parent=5 // pred_check_branch
      %192 = sbr.rel (%p189) target = $region28
    $region27: #{iou_pallas.1} parent=5 // pred_region
      %s193 = ssub.s32 %s10, 1
      %s194 = sadd.s32 %s19, %s20
      %p195 = scmp.lt.s32.totalorder %s194, 0
      %s196 = scalar_select %p195, %s194, 0
      %s197 = smul.u32 2, %s196
      %p198 = scmp.lt.s32.totalorder %s197, 1
      %s199 = scalar_select %p198, %s197, 1
      %s200 = smul.addr %s199, 8
      %s201 = scalar_lea.vmem %s0, %s200
      %p202 = pneg %p54
      %p203 = pneg %p51
      %s204 = sadd.s32 %s19, %s20
      %p205 = scmp.lt.s32.totalorder %s204, 0
      %s206 = scalar_select %p205, %s204, 0
      %s207 = smul.u32 2, %s206
      %p208 = scmp.lt.s32.totalorder %s207, 1
      %s209 = scalar_select %p208, %s207, 1
      %s210 = smul.addr %s209, 8
      %s211 = scalar_lea.vmem %s1, %s210
      %p212 = pneg %p86
      %p213 = pneg %p83
      %p214 = pneg %p112
      %p215 = pneg %p109
      %p216 = scmp.lt.s32.totalorder %s19, 1
      %s217 = scalar_select %p216, %s19, 1
      %s218 = smul.addr %s217, 8
      %s219 = scalar_lea.vmem %s2, %s218
      %p220 = pneg %p138
      %p221 = pneg %p135
      %p222 = scmp.lt.s32.totalorder %s19, 1
      %s223 = scalar_select %p222, %s19, 1
      %s224 = smul.addr %s223, 8
      %s225 = scalar_lea.vmem %s3, %s224
      %s226 = sadd.s32 %s19, %s20
      %p227 = scmp.lt.s32.totalorder %s226, 0
      %s228 = scalar_select %p227, %s226, 0
      %s229 = smul.u32 2, %s228
      %p230 = scmp.lt.s32.totalorder %s229, 1
      %s231 = scalar_select %p230, %s229, 1
      %s232 = smul.addr %s231, 8
      %s233 = scalar_lea.vmem %s0, %s232
      %s234 = sadd.s32 %s19, %s20
      %p235 = scmp.lt.s32.totalorder %s234, 0
      %s236 = scalar_select %p235, %s234, 0
      %s237 = smul.u32 2, %s236
      %s238 = sadd.s32 %s19, %s20
      %p239 = scmp.lt.s32.totalorder %s238, 0
      %s240 = scalar_select %p239, %s238, 0
      %s241 = smul.u32 2, %s240
      %p242 = scmp.lt.s32.totalorder %s241, 1
      %s243 = scalar_select %p242, %s241, 1
      %s244 = smul.addr %s243, 8
      %s245 = scalar_lea.vmem %s1, %s244
      %s246 = sadd.s32 %s19, %s20
      %p247 = scmp.lt.s32.totalorder %s246, 0
      %s248 = scalar_select %p247, %s246, 0
      %s249 = smul.u32 2, %s248
      %p250 = scmp.lt.s32.totalorder %s19, 1
      %s251 = scalar_select %p250, %s19, 1
      %s252 = smul.addr %s251, 8
      %s253 = scalar_lea.vmem %s2, %s252
      %p254 = scmp.lt.s32.totalorder %s19, 1
      %s255 = scalar_select %p254, %s19, 1
      %s256 = smul.addr %s255, 8
      %s257 = scalar_lea.vmem %s3, %s256
      %p258 = scmp.eq.s32.totalorder %s20, 0
      // Predicated region
      $region29: #{iou_pallas.1} parent=27 // pred_check
        %p259 = pneg %p258
      $region30: #{iou_pallas.1} parent=27 // pred_check_branch
        %261 = sbr.rel (%p259) target = $region32
      $region31: #{iou_pallas.1} parent=27 // pred_region
        %262 = vst [vmem:[#allocation2] sm:$0xff] 0.0
        %263 = vst [vmem:[#allocation2 + $0x8] sm:$0xff] 0.0
        %264 = vst [vmem:[#allocation3] sm:$0xff] 0.0
        %265 = vst [vmem:[#allocation3 + $0x8] sm:$0xff] 0.0
      $region32: #{iou_pallas.1} parent=27 // pred_fallthru
        _
      %s266 = sadd.s32 %s19, %s20
      %p267 = scmp.lt.s32.totalorder %s266, 1
      // Predicated region
      $region33: #{iou_pallas.1} parent=27 // pred_check
        %p268 = pneg %p267
      $region34: #{iou_pallas.1} parent=27 // pred_check_branch
        %270 = sbr.rel (%p268) target = $region36
      $region35: #{iou_pallas.1} parent=27 // pred_region
        %v271 = vld [vmem:[%s233] sm:$0xff]
        %v272 = vld [vmem:[%s233 + $0x8] sm:$0xff]
        %v273 = vld [vmem:[%s245] sm:$0xff]
        %v274 = vld [vmem:[%s245 + $0x8] sm:$0xff]
        %v275 = vld [vmem:[#allocation2] sm:$0xff]
        %v276 = vld [vmem:[#allocation2 + $0x8] sm:$0xff]
        %v277 = vmul.f32 %v271, %v273
        %v278 = vmul.f32 %v272, %v274
        %v279 = vadd.f32 %v275, %v277
        %v280 = vadd.f32 %v276, %v278
        %281 = vst [vmem:[#allocation2] sm:$0xff] %v279
        %282 = vst [vmem:[#allocation2 + $0x8] sm:$0xff] %v280
        %v283 = vld [vmem:[#allocation3] sm:$0xff]
        %v284 = vld [vmem:[#allocation3 + $0x8] sm:$0xff]
        %v285 = vadd.f32 %v271, %v273
        %v286 = vadd.f32 %v272, %v274
        %v287 = vadd.f32 %v283, %v285
        %v288 = vadd.f32 %v284, %v286
        %289 = vst [vmem:[#allocation3] sm:$0xff] %v287
        %290 = vst [vmem:[#allocation3 + $0x8] sm:$0xff] %v288
      $region36: #{iou_pallas.1} parent=27 // pred_fallthru
        _
      // Predicated region
      $region37: #{iou_pallas.1} parent=27 // pred_check
        %p291 = pneg %p258
      $region38: #{iou_pallas.1} parent=27 // pred_check_branch
        %293 = sbr.rel (%p291) target = $region40
      $region39: #{iou_pallas.1} parent=27 // pred_region
        %v294 = vld [vmem:[#allocation2] sm:$0xff]
        %v295 = vld [vmem:[#allocation2 + $0x8] sm:$0xff]
        %v296 = vadd.f32 %v294, %v295
        %297 = vadd.xlane.f32.xlu0 %v296
        %v298 = vpop.xlane.xlu0 %297
        %v299 = vrot.slane %v298, 4
        %v300 = vadd.f32 %v298, %v299
        %v301 = vrot.slane %v300, 2
        %v302 = vadd.f32 %v300, %v301
        %v303 = vrot.slane %v302, 1
        %v304 = vadd.f32 %v302, %v303
        %s305 = vtos %v304
        %v306 = vld [vmem:[#allocation3] sm:$0xff]
        %v307 = vld [vmem:[#allocation3 + $0x8] sm:$0xff]
        %v308 = vadd.f32 %v306, %v307
        %309 = vadd.xlane.f32.xlu0 %v308
        %v310 = vpop.xlane.xlu0 %309
        %v311 = vrot.slane %v310, 4
        %v312 = vadd.f32 %v310, %v311
        %v313 = vrot.slane %v312, 2
        %v314 = vadd.f32 %v312, %v313
        %v315 = vrot.slane %v314, 1
        %v316 = vadd.f32 %v314, %v315
        %s317 = vtos %v316
        %v318 = vstv %s305
        %319 = vst [vmem:[%s253] sm:$0xff] %v318
        %v320 = vstv %s317
        %321 = vst [vmem:[%s257] sm:$0xff] %v320
      $region40: #{iou_pallas.1} parent=27 // pred_fallthru
        _
      %p322 = scmp.lt.s32.totalorder %s19, 1
      %s323 = scalar_select %p322, %s19, 1
      %s324 = smul.addr %s323, 8
      %s325 = scalar_lea.vmem %s2, %s324
      %p326 = scmp.lt.s32.totalorder %s19, 1
      %s327 = scalar_select %p326, %s19, 1
      %s328 = smul.addr %s327, 8
      %s329 = scalar_lea.vmem %s3, %s328
      // Predicated region
      $region41: #{iou_pallas.1} parent=27 // pred_check
        %p330 = pneg %p109
      $region42: #{iou_pallas.1} parent=27 // pred_check_branch
        %332 = sbr.rel (%p330) target = $region44
      $region43: #{iou_pallas.1} parent=27 // pred_region
        _
      $region44: #{iou_pallas.1} parent=27 // pred_fallthru
        _
      // Predicated region
      $region45: #{iou_pallas.1} parent=27 // pred_check
        %p333 = pneg %p135
      $region46: #{iou_pallas.1} parent=27 // pred_check_branch
        %335 = sbr.rel (%p333) target = $region48
      $region47: #{iou_pallas.1} parent=27 // pred_region
        _
      $region48: #{iou_pallas.1} parent=27 // pred_fallthru
        _
    $region28: #{iou_pallas.1} parent=5 // pred_fallthru
      _
    %p336 = scmp.le.s32.totalorder 2, %s10
    // Predicated region
    $region49: #{iou_pallas.1} parent=5 // pred_check
      %p337 = pneg %p336
    $region50: #{iou_pallas.1} parent=5 // pred_check_branch
      %339 = sbr.rel (%p337) target = $region52
    $region51: #{iou_pallas.1} parent=5 // pred_region
      %s340 = ssub.s32 %s10, 2
      // Predicated region
      $region53: #{iou_pallas.1} parent=51 // pred_check
        %p341 = pneg %p115
      $region54: #{iou_pallas.1} parent=51 // pred_check_branch
        %343 = sbr.rel (%p341) target = $region56
      $region55: #{iou_pallas.1} parent=51 // pred_region
        %p344 = scmp.lt.s32.totalorder %s21, 1
        %s345 = scalar_select %p344, %s21, 1
        %s346 = smul.addr %s345, 8
        %s347 = scalar_lea.vmem %s2, %s346
      $region56: #{iou_pallas.1} parent=51 // pred_fallthru
        _
      // Predicated region
      $region57: #{iou_pallas.1} parent=51 // pred_check
        %p348 = pneg %p141
      $region58: #{iou_pallas.1} parent=51 // pred_check_branch
        %350 = sbr.rel (%p348) target = $region60
      $region59: #{iou_pallas.1} parent=51 // pred_region
        %p351 = scmp.lt.s32.totalorder %s21, 1
        %s352 = scalar_select %p351, %s21, 1
        %s353 = smul.addr %s352, 8
        %s354 = scalar_lea.vmem %s3, %s353
      $region60: #{iou_pallas.1} parent=51 // pred_fallthru
        _
    $region52: #{iou_pallas.1} parent=5 // pred_fallthru
      _
  $region6: #{iou_pallas.1} parent=0 // loop_footer
    %s14 = sadd.s32 1, %s10
  $region7: #{iou_pallas.1} parent=0 // loop_footer_branch
    %9 = sbr.rel target = $region3
  $region8: #{iou_pallas.1} parent=0 // loop_exit
    _

</llo_original>
